<compile_context>
chip_gen: v7x
topology: tpu7x:2x2x1
jax: 0.10.0
libtpu: 0.0.40
codegen_flags: <defaults>
</compile_context>

<pallas_src>
import jax
import jax.numpy as jnp
from jax import lax
from jax.experimental import pallas as pl
from jax.experimental.pallas import tpu as pltpu

HIDDEN = 6
IN_F = 2
OUT_F = 2
LANES = 128
PAIR = 2 * LANES          # 256 lanes: 128 samples * (x0, x1) interleaved per sublane-row
CHUNK_ROWS = 16           # rows per in-kernel chunk (bounds live vregs)
MAX_ROWS = 256            # max sublane-rows per grid step (32768 samples / step)


def flappy_kernel(w1_ref, b1_ref, w2_ref, b2_ref, x_ref, o_ref):
    # x_ref / o_ref: [rt, 256] f32.  Lane 2j holds feature 0 of sample j, lane 2j+1
    # holds feature 1 of the same sample (row-major view of the original [B, 2]).
    # w1_ref [6,2], b1_ref [6], w2_ref [2,6], b2_ref [2]: SMEM scalars, pre-folded
    # for the tanh form of sigmoid (see flappy_net()).
    rt = x_ref.shape[0]
    ch = min(CHUNK_ROWS, rt)
    n_chunks = rt // ch

    lane = lax.broadcasted_iota(jnp.int32, (ch, PAIR), 1)
    even = (lane & 1) == 0                         # True on feature-0 lanes

    def chunk(c, carry):
        r0 = pl.multiple_of(c * ch, ch)
        t = x_ref[pl.ds(r0, ch), :]                # [ch, 256], interleaved features
        # De-interleave: every lane gets both features of its own sample (XLU rolls).
        rp = pltpu.roll(t, 1, axis=1)              # rp[:, k] = t[:, k-1]
        rm = pltpu.roll(t, PAIR - 1, axis=1)       # rm[:, k] = t[:, k+1]
        x0 = jnp.where(even, t, rp)                # feature 0 on every lane
        x1 = jnp.where(even, rm, t)                # feature 1 on every lane

        acc0 = None
        acc1 = None
        for f in range(HIDDEN):                    # fc1 + sigmoid + fc2, fused
            pre = w1_ref[f, 0] * x0 + w1_ref[f, 1] * x1 + b1_ref[f]
            hf = jnp.tanh(pre)                     # 1 EUP push per hidden
            if f == 0:
                acc0 = w2_ref[0, f] * hf + b2_ref[0]
                acc1 = w2_ref[1, f] * hf + b2_ref[1]
            else:
                acc0 = acc0 + w2_ref[0, f] * hf
                acc1 = acc1 + w2_ref[1, f] * hf

        out = jnp.where(even, acc0, acc1)          # out0 -> even lanes, out1 -> odd
        o_ref[pl.ds(r0, ch), :] = out.astype(o_ref.dtype)   # lane-dense store
        return carry

    lax.fori_loop(0, n_chunks, chunk, 0)


def _tile_rows(nb):
    """Pick sublane-rows per grid step (rt) and number of steps (g)."""
    if nb <= CHUNK_ROWS:
        return nb, 1                                # single full-array block
    g = max(2, pl.cdiv(nb, MAX_ROWS))               # >=2 steps so v7x splits across TCs
    rt = CHUNK_ROWS * pl.cdiv(pl.cdiv(nb, g), CHUNK_ROWS)
    return rt, pl.cdiv(nb, rt)


@jax.jit
def flappy_net(x, w1, b1, w2, b2):
    """FlappyNet forward: sigmoid(x @ w1.T + b1) @ w2.T + b2.

    x : [B, 2];  w1: [6, 2];  b1: [6];  w2: [2, 6];  b2: [2]  (torch [out,in] layouts)
    returns [B, 2] float32.
    """
    B = x.shape[0]
    nb = pl.cdiv(B, LANES)                          # number of 128-sample rows
    rt, g = _tile_rows(nb)
    nbp = g * rt
    bp = nbp * LANES

    x = x.astype(jnp.float32)
    if bp != B:
        x = jnp.pad(x, ((0, bp - B), (0, 0)))
    x2 = x.reshape(nbp, PAIR)                       # free row-major reshape

    # Fold sigmoid(z) = 0.5*tanh(z/2) + 0.5 into the (tiny) weights.
    w1h = 0.5 * w1.astype(jnp.float32)
    b1h = 0.5 * b1.astype(jnp.float32)
    w2f = w2.astype(jnp.float32)
    w2h = 0.5 * w2f
    b2h = b2.astype(jnp.float32) + 0.5 * jnp.sum(w2f, axis=1)

    smem = pl.BlockSpec(memory_space=pltpu.MemorySpace.SMEM)
    out2 = pl.pallas_call(
        flappy_kernel,
        out_shape=jax.ShapeDtypeStruct((nbp, PAIR), jnp.float32),
        grid=(g,),
        in_specs=[smem, smem, smem, smem,           # weights/biases resident in SMEM
                  pl.BlockSpec((rt, PAIR), lambda i: (i, 0))],
        out_specs=pl.BlockSpec((rt, PAIR), lambda i: (i, 0)),
        compiler_params=pltpu.CompilerParams(
            dimension_semantics=("parallel",)),
    )(w1h, b1h, w2h, b2h, x2)

    return out2.reshape(bp, OUT_F)[:B]              # free reshape + cheap slice


def init_params(key):
    """uniform(-1, 1) init, matching nn.init.uniform_(param, -1, 1); torch [out, in] layout."""
    k1, k2, k3, k4 = jax.random.split(key, 4)
    w1 = jax.random.uniform(k1, (HIDDEN, IN_F), jnp.float32, -1.0, 1.0)   # fc1.weight
    b1 = jax.random.uniform(k2, (HIDDEN,), jnp.float32, -1.0, 1.0)        # fc1.bias
    w2 = jax.random.uniform(k3, (OUT_F, HIDDEN), jnp.float32, -1.0, 1.0)  # fc2.weight
    b2 = jax.random.uniform(k4, (OUT_F,), jnp.float32, -1.0, 1.0)         # fc2.bias
    return w1, b1, w2, b2


def flappy_net_ref(x, w1, b1, w2, b2):
    h = jax.nn.sigmoid(x @ w1.T + b1)
    return h @ w2.T + b2


if __name__ == "__main__":
    key = jax.random.PRNGKey(0)
    kx, kp = jax.random.split(key)
    w1, b1, w2, b2 = init_params(kp)

    # Small batch (single-block path; one FlappyNet tick for many birds at once).
    x = jax.random.normal(kx, (256, IN_F), jnp.float32)
    out = jax.block_until_ready(flappy_net(x, w1, b1, w2, b2))
    ref = flappy_net_ref(x, w1, b1, w2, b2)
    assert out.shape == (256, OUT_F)
    assert jnp.allclose(out, ref, atol=1e-4, rtol=1e-4)

    # Ragged tiny batch (padding path, sub-8-row single tile).
    x_small = jax.random.normal(jax.random.fold_in(kx, 1), (3, IN_F), jnp.float32)
    out_small = jax.block_until_ready(flappy_net(x_small, w1, b1, w2, b2))
    ref_small = flappy_net_ref(x_small, w1, b1, w2, b2)
    assert out_small.shape == (3, OUT_F)
    assert jnp.allclose(out_small, ref_small, atol=1e-4, rtol=1e-4)

    # Multi-step grid + in-kernel chunk loop + batch padding, all at once.
    x_big = jax.random.normal(jax.random.fold_in(kx, 2), (5000, IN_F), jnp.float32)
    out_big = jax.block_until_ready(flappy_net(x_big, w1, b1, w2, b2))
    ref_big = flappy_net_ref(x_big, w1, b1, w2, b2)
    assert out_big.shape == (5000, OUT_F)
    assert jnp.allclose(out_big, ref_big, atol=1e-4, rtol=1e-4)

    # `move` decision semantics (output[0] > output[1]) — plain host-side glue.
    _ = bool(out_small[0, 0] > out_small[0, 1])

    print("KERNEL_OK")
</pallas_src>

<mosaic_0001>
module attributes {stable_mosaic.version = 11 : i64} {
  func.func @flappy_kernel(%arg0: i32, %arg1: memref<6x2xf32, #tpu.memory_space<smem>>, %arg2: memref<6xf32, #tpu.memory_space<smem>>, %arg3: memref<2x6xf32, #tpu.memory_space<smem>>, %arg4: memref<2xf32, #tpu.memory_space<smem>>, %arg5: memref<2x256xf32, #tpu.memory_space<vmem>>, %arg6: memref<2x256xf32, #tpu.memory_space<vmem>>) attributes {dimension_semantics = [#tpu.dimension_semantics<parallel>], iteration_bounds = array<i64: 1>, scalar_prefetch = 0 : i64, scratch_operands = 0 : i64, tpu.core_type = #tpu.core_type<tc>, window_params = [{transform_indices = @transform_0, window_bounds = array<i64: 6, 2>}, {transform_indices = @transform_1, window_bounds = array<i64: 6>}, {transform_indices = @transform_2, window_bounds = array<i64: 2, 6>}, {transform_indices = @transform_3, window_bounds = array<i64: 2>}, {transform_indices = @transform_4, window_bounds = array<i64: 2, 256>}, {transform_indices = @transform_5, window_bounds = array<i64: 2, 256>}]} {
    %0 = tpu.iota {dimensions = array<i32: 1>} : vector<2x256xi32>
    %c1_i32 = arith.constant 1 : i32
    %1 = vector.broadcast %c1_i32 : i32 to vector<2x256xi32>
    %2 = arith.andi %0, %1 : vector<2x256xi32>
    %c0_i32 = arith.constant 0 : i32
    %3 = vector.broadcast %c0_i32 : i32 to vector<2x256xi32>
    %4 = arith.cmpi eq, %2, %3 : vector<2x256xi32>
    %c0_i32_0 = arith.constant 0 : i32
    %c2_i32 = arith.constant 2 : i32
    %5 = arith.muli %c0_i32_0, %c2_i32 : i32
    %6 = tpu.assume_multiple %5, 2 : i32
    %7 = arith.index_cast %6 : i32 to index
    %c0 = arith.constant 0 : index
    %8 = vector.load %arg5[%7, %c0] : memref<2x256xf32, #tpu.memory_space<vmem>>, vector<2x256xf32>
    %c1_i32_1 = arith.constant 1 : i32
    %9 = tpu.dynamic_rotate %8 by %c1_i32_1 dim 1 : vector<2x256xf32>, i32 -> vector<2x256xf32>
    %c255_i32 = arith.constant 255 : i32
    %10 = tpu.dynamic_rotate %8 by %c255_i32 dim 1 : vector<2x256xf32>, i32 -> vector<2x256xf32>
    %11 = arith.select %4, %8, %9 : vector<2x256xi1>, vector<2x256xf32>
    %12 = arith.select %4, %10, %8 : vector<2x256xi1>, vector<2x256xf32>
    %c0_2 = arith.constant 0 : index
    %c0_3 = arith.constant 0 : index
    %13 = memref.load %arg1[%c0_2, %c0_3] : memref<6x2xf32, #tpu.memory_space<smem>>
    %14 = vector.broadcast %13 : f32 to vector<2x256xf32>
    %15 = arith.mulf %14, %11 : vector<2x256xf32>
    %c0_4 = arith.constant 0 : index
    %c1 = arith.constant 1 : index
    %16 = memref.load %arg1[%c0_4, %c1] : memref<6x2xf32, #tpu.memory_space<smem>>
    %17 = vector.broadcast %16 : f32 to vector<2x256xf32>
    %18 = arith.mulf %17, %12 : vector<2x256xf32>
    %19 = arith.addf %15, %18 : vector<2x256xf32>
    %c0_5 = arith.constant 0 : index
    %20 = memref.load %arg2[%c0_5] : memref<6xf32, #tpu.memory_space<smem>>
    %21 = vector.broadcast %20 : f32 to vector<2x256xf32>
    %22 = arith.addf %19, %21 : vector<2x256xf32>
    %23 = math.tanh %22 : vector<2x256xf32>
    %c0_6 = arith.constant 0 : index
    %c0_7 = arith.constant 0 : index
    %24 = memref.load %arg3[%c0_6, %c0_7] : memref<2x6xf32, #tpu.memory_space<smem>>
    %25 = vector.broadcast %24 : f32 to vector<2x256xf32>
    %26 = arith.mulf %25, %23 : vector<2x256xf32>
    %c0_8 = arith.constant 0 : index
    %27 = memref.load %arg4[%c0_8] : memref<2xf32, #tpu.memory_space<smem>>
    %28 = vector.broadcast %27 : f32 to vector<2x256xf32>
    %29 = arith.addf %26, %28 : vector<2x256xf32>
    %c1_9 = arith.constant 1 : index
    %c0_10 = arith.constant 0 : index
    %30 = memref.load %arg3[%c1_9, %c0_10] : memref<2x6xf32, #tpu.memory_space<smem>>
    %31 = vector.broadcast %30 : f32 to vector<2x256xf32>
    %32 = arith.mulf %31, %23 : vector<2x256xf32>
    %c1_11 = arith.constant 1 : index
    %33 = memref.load %arg4[%c1_11] : memref<2xf32, #tpu.memory_space<smem>>
    %34 = vector.broadcast %33 : f32 to vector<2x256xf32>
    %35 = arith.addf %32, %34 : vector<2x256xf32>
    %c1_12 = arith.constant 1 : index
    %c0_13 = arith.constant 0 : index
    %36 = memref.load %arg1[%c1_12, %c0_13] : memref<6x2xf32, #tpu.memory_space<smem>>
    %37 = vector.broadcast %36 : f32 to vector<2x256xf32>
    %38 = arith.mulf %37, %11 : vector<2x256xf32>
    %c1_14 = arith.constant 1 : index
    %c1_15 = arith.constant 1 : index
    %39 = memref.load %arg1[%c1_14, %c1_15] : memref<6x2xf32, #tpu.memory_space<smem>>
    %40 = vector.broadcast %39 : f32 to vector<2x256xf32>
    %41 = arith.mulf %40, %12 : vector<2x256xf32>
    %42 = arith.addf %38, %41 : vector<2x256xf32>
    %c1_16 = arith.constant 1 : index
    %43 = memref.load %arg2[%c1_16] : memref<6xf32, #tpu.memory_space<smem>>
    %44 = vector.broadcast %43 : f32 to vector<2x256xf32>
    %45 = arith.addf %42, %44 : vector<2x256xf32>
    %46 = math.tanh %45 : vector<2x256xf32>
    %c0_17 = arith.constant 0 : index
    %c1_18 = arith.constant 1 : index
    %47 = memref.load %arg3[%c0_17, %c1_18] : memref<2x6xf32, #tpu.memory_space<smem>>
    %48 = vector.broadcast %47 : f32 to vector<2x256xf32>
    %49 = arith.mulf %48, %46 : vector<2x256xf32>
    %50 = arith.addf %29, %49 : vector<2x256xf32>
    %c1_19 = arith.constant 1 : index
    %c1_20 = arith.constant 1 : index
    %51 = memref.load %arg3[%c1_19, %c1_20] : memref<2x6xf32, #tpu.memory_space<smem>>
    %52 = vector.broadcast %51 : f32 to vector<2x256xf32>
    %53 = arith.mulf %52, %46 : vector<2x256xf32>
    %54 = arith.addf %35, %53 : vector<2x256xf32>
    %c2 = arith.constant 2 : index
    %c0_21 = arith.constant 0 : index
    %55 = memref.load %arg1[%c2, %c0_21] : memref<6x2xf32, #tpu.memory_space<smem>>
    %56 = vector.broadcast %55 : f32 to vector<2x256xf32>
    %57 = arith.mulf %56, %11 : vector<2x256xf32>
    %c2_22 = arith.constant 2 : index
    %c1_23 = arith.constant 1 : index
    %58 = memref.load %arg1[%c2_22, %c1_23] : memref<6x2xf32, #tpu.memory_space<smem>>
    %59 = vector.broadcast %58 : f32 to vector<2x256xf32>
    %60 = arith.mulf %59, %12 : vector<2x256xf32>
    %61 = arith.addf %57, %60 : vector<2x256xf32>
    %c2_24 = arith.constant 2 : index
    %62 = memref.load %arg2[%c2_24] : memref<6xf32, #tpu.memory_space<smem>>
    %63 = vector.broadcast %62 : f32 to vector<2x256xf32>
    %64 = arith.addf %61, %63 : vector<2x256xf32>
    %65 = math.tanh %64 : vector<2x256xf32>
    %c0_25 = arith.constant 0 : index
    %c2_26 = arith.constant 2 : index
    %66 = memref.load %arg3[%c0_25, %c2_26] : memref<2x6xf32, #tpu.memory_space<smem>>
    %67 = vector.broadcast %66 : f32 to vector<2x256xf32>
    %68 = arith.mulf %67, %65 : vector<2x256xf32>
    %69 = arith.addf %50, %68 : vector<2x256xf32>
    %c1_27 = arith.constant 1 : index
    %c2_28 = arith.constant 2 : index
    %70 = memref.load %arg3[%c1_27, %c2_28] : memref<2x6xf32, #tpu.memory_space<smem>>
    %71 = vector.broadcast %70 : f32 to vector<2x256xf32>
    %72 = arith.mulf %71, %65 : vector<2x256xf32>
    %73 = arith.addf %54, %72 : vector<2x256xf32>
    %c3 = arith.constant 3 : index
    %c0_29 = arith.constant 0 : index
    %74 = memref.load %arg1[%c3, %c0_29] : memref<6x2xf32, #tpu.memory_space<smem>>
    %75 = vector.broadcast %74 : f32 to vector<2x256xf32>
    %76 = arith.mulf %75, %11 : vector<2x256xf32>
    %c3_30 = arith.constant 3 : index
    %c1_31 = arith.constant 1 : index
    %77 = memref.load %arg1[%c3_30, %c1_31] : memref<6x2xf32, #tpu.memory_space<smem>>
    %78 = vector.broadcast %77 : f32 to vector<2x256xf32>
    %79 = arith.mulf %78, %12 : vector<2x256xf32>
    %80 = arith.addf %76, %79 : vector<2x256xf32>
    %c3_32 = arith.constant 3 : index
    %81 = memref.load %arg2[%c3_32] : memref<6xf32, #tpu.memory_space<smem>>
    %82 = vector.broadcast %81 : f32 to vector<2x256xf32>
    %83 = arith.addf %80, %82 : vector<2x256xf32>
    %84 = math.tanh %83 : vector<2x256xf32>
    %c0_33 = arith.constant 0 : index
    %c3_34 = arith.constant 3 : index
    %85 = memref.load %arg3[%c0_33, %c3_34] : memref<2x6xf32, #tpu.memory_space<smem>>
    %86 = vector.broadcast %85 : f32 to vector<2x256xf32>
    %87 = arith.mulf %86, %84 : vector<2x256xf32>
    %88 = arith.addf %69, %87 : vector<2x256xf32>
    %c1_35 = arith.constant 1 : index
    %c3_36 = arith.constant 3 : index
    %89 = memref.load %arg3[%c1_35, %c3_36] : memref<2x6xf32, #tpu.memory_space<smem>>
    %90 = vector.broadcast %89 : f32 to vector<2x256xf32>
    %91 = arith.mulf %90, %84 : vector<2x256xf32>
    %92 = arith.addf %73, %91 : vector<2x256xf32>
    %c4 = arith.constant 4 : index
    %c0_37 = arith.constant 0 : index
    %93 = memref.load %arg1[%c4, %c0_37] : memref<6x2xf32, #tpu.memory_space<smem>>
    %94 = vector.broadcast %93 : f32 to vector<2x256xf32>
    %95 = arith.mulf %94, %11 : vector<2x256xf32>
    %c4_38 = arith.constant 4 : index
    %c1_39 = arith.constant 1 : index
    %96 = memref.load %arg1[%c4_38, %c1_39] : memref<6x2xf32, #tpu.memory_space<smem>>
    %97 = vector.broadcast %96 : f32 to vector<2x256xf32>
    %98 = arith.mulf %97, %12 : vector<2x256xf32>
    %99 = arith.addf %95, %98 : vector<2x256xf32>
    %c4_40 = arith.constant 4 : index
    %100 = memref.load %arg2[%c4_40] : memref<6xf32, #tpu.memory_space<smem>>
    %101 = vector.broadcast %100 : f32 to vector<2x256xf32>
    %102 = arith.addf %99, %101 : vector<2x256xf32>
    %103 = math.tanh %102 : vector<2x256xf32>
    %c0_41 = arith.constant 0 : index
    %c4_42 = arith.constant 4 : index
    %104 = memref.load %arg3[%c0_41, %c4_42] : memref<2x6xf32, #tpu.memory_space<smem>>
    %105 = vector.broadcast %104 : f32 to vector<2x256xf32>
    %106 = arith.mulf %105, %103 : vector<2x256xf32>
    %107 = arith.addf %88, %106 : vector<2x256xf32>
    %c1_43 = arith.constant 1 : index
    %c4_44 = arith.constant 4 : index
    %108 = memref.load %arg3[%c1_43, %c4_44] : memref<2x6xf32, #tpu.memory_space<smem>>
    %109 = vector.broadcast %108 : f32 to vector<2x256xf32>
    %110 = arith.mulf %109, %103 : vector<2x256xf32>
    %111 = arith.addf %92, %110 : vector<2x256xf32>
    %c5 = arith.constant 5 : index
    %c0_45 = arith.constant 0 : index
    %112 = memref.load %arg1[%c5, %c0_45] : memref<6x2xf32, #tpu.memory_space<smem>>
    %113 = vector.broadcast %112 : f32 to vector<2x256xf32>
    %114 = arith.mulf %113, %11 : vector<2x256xf32>
    %c5_46 = arith.constant 5 : index
    %c1_47 = arith.constant 1 : index
    %115 = memref.load %arg1[%c5_46, %c1_47] : memref<6x2xf32, #tpu.memory_space<smem>>
    %116 = vector.broadcast %115 : f32 to vector<2x256xf32>
    %117 = arith.mulf %116, %12 : vector<2x256xf32>
    %118 = arith.addf %114, %117 : vector<2x256xf32>
    %c5_48 = arith.constant 5 : index
    %119 = memref.load %arg2[%c5_48] : memref<6xf32, #tpu.memory_space<smem>>
    %120 = vector.broadcast %119 : f32 to vector<2x256xf32>
    %121 = arith.addf %118, %120 : vector<2x256xf32>
    %122 = math.tanh %121 : vector<2x256xf32>
    %c0_49 = arith.constant 0 : index
    %c5_50 = arith.constant 5 : index
    %123 = memref.load %arg3[%c0_49, %c5_50] : memref<2x6xf32, #tpu.memory_space<smem>>
    %124 = vector.broadcast %123 : f32 to vector<2x256xf32>
    %125 = arith.mulf %124, %122 : vector<2x256xf32>
    %126 = arith.addf %107, %125 : vector<2x256xf32>
    %c1_51 = arith.constant 1 : index
    %c5_52 = arith.constant 5 : index
    %127 = memref.load %arg3[%c1_51, %c5_52] : memref<2x6xf32, #tpu.memory_space<smem>>
    %128 = vector.broadcast %127 : f32 to vector<2x256xf32>
    %129 = arith.mulf %128, %122 : vector<2x256xf32>
    %130 = arith.addf %111, %129 : vector<2x256xf32>
    %131 = arith.select %4, %126, %130 : vector<2x256xi1>, vector<2x256xf32>
    %132 = arith.index_cast %6 : i32 to index
    %c0_53 = arith.constant 0 : index
    %133 = vector.load %arg6[%132, %c0_53] : memref<2x256xf32, #tpu.memory_space<vmem>>, vector<2x256xf32>
    tpu.vector_store %arg6[%132, %c0_53], %131 {strides = array<i32>} : memref<2x256xf32, #tpu.memory_space<vmem>>, vector<2x256xf32>,
    %c1_i32_54 = arith.constant 1 : i32
    return
  }
  func.func @transform_0(%arg0: i32) -> (i32, i32) {
    %c0_i32 = arith.constant 0 : i32
    %c0_i32_0 = arith.constant 0 : i32
    %c0_i32_1 = arith.constant 0 : i32
    return %c0_i32, %c0_i32_0 : i32, i32
  }
  func.func @transform_1(%arg0: i32) -> i32 {
    %c0_i32 = arith.constant 0 : i32
    %c0_i32_0 = arith.constant 0 : i32
    return %c0_i32 : i32
  }
  func.func @transform_2(%arg0: i32) -> (i32, i32) {
    %c0_i32 = arith.constant 0 : i32
    %c0_i32_0 = arith.constant 0 : i32
    %c0_i32_1 = arith.constant 0 : i32
    return %c0_i32, %c0_i32_0 : i32, i32
  }
  func.func @transform_3(%arg0: i32) -> i32 {
    %c0_i32 = arith.constant 0 : i32
    %c0_i32_0 = arith.constant 0 : i32
    return %c0_i32 : i32
  }
  func.func @transform_4(%arg0: i32) -> (i32, i32) {
    %c0_i32 = arith.constant 0 : i32
    %c0_i32_0 = arith.constant 0 : i32
    return %arg0, %c0_i32 : i32, i32
  }
  func.func @transform_5(%arg0: i32) -> (i32, i32) {
    %c0_i32 = arith.constant 0 : i32
    %c0_i32_0 = arith.constant 0 : i32
    return %arg0, %c0_i32 : i32, i32
  }
}

</mosaic_0001>

<llo_original>
// kernel: flappy_net.1
$region0: #{flappy_net.1}
  #allocation0 [shape = 'u32[]', space=smem, size = 0x4, offset = 0x4, fixed_abs, tag = 'smem constant byte address 0x4 - core index']
  #allocation1 [shape = 'u32[144,128]{1,0:T(1,128)}', space=vmem, size = 0x12000, scoped, tag = 'internal scratch']
  %s0 = inlined_call_operand.vmem [shape: f32[6,2], index: 0, kind: input, shape index: {}]
  %s1 = inlined_call_operand.vmem [shape: f32[6], index: 1, kind: input, shape index: {}]
  %s2 = inlined_call_operand.vmem [shape: f32[2,6], index: 2, kind: input, shape index: {}]
  %s3 = inlined_call_operand.vmem [shape: f32[2], index: 3, kind: input, shape index: {}]
  %s4 = inlined_call_operand.vmem [shape: f32[2,256], index: 4, kind: input, shape index: {}]
  %s5 = inlined_call_operand.vmem [shape: f32[2,256], index: 5, kind: output, shape index: {}]
  %s6 = sld [smem:[#allocation0]]
  $region46: #{flappy_net.1} parent=0
    _
  %s8 = ssub.s32 1, %s6
  %s9 = scalar_select 0, %s8, %s6
  $region1: #{flappy_net.1} parent=0
    #allocation2 [shape = 'u8[4096]{0}', space=smem, size = 0x1000, scoped, tag = 'input window, operand 0, single buffered']
    #allocation3 [shape = 's32[1]{0}', space=sflag, size = 0x4, scoped, tag = 'scoped memory for flappy_net.1']
    #allocation4 [shape = 'u8[512]{0}', space=smem, size = 0x200, scoped, tag = 'input window, operand 1, single buffered']
    #allocation5 [shape = 's32[1]{0}', space=sflag, size = 0x4, scoped, tag = 'scoped memory for flappy_net.1']
    #allocation6 [shape = 'u8[1024]{0}', space=smem, size = 0x400, scoped, tag = 'input window, operand 2, single buffered']
    #allocation7 [shape = 'u8[512]{0}', space=smem, size = 0x200, scoped, tag = 'input window, operand 3, single buffered']
    #allocation8 [shape = 's32[1]{0}', space=sflag, size = 0x4, scoped, tag = 'scoped memory for flappy_net.1']
    %10 = vsyncpa [#allocation3], 0
    %11 = vsyncpa [#allocation5], 0
    %12 = vsyncpa [#allocation8], 0
    // Predicated region
    $region2: #{flappy_net.1} parent=1 // pred_check
      _
    $region3: #{flappy_net.1} parent=1 // pred_check_branch
      %14 = sbr.rel (0) target = $region5
    $region4: #{flappy_net.1} parent=1 // pred_region
      %s16 = ssub.s32 128, 128
      %17 = vsyncadd [#allocation3], %s16
      %s19 = sshll.u32 %s0, 4
      %s20 = int_to_ptr.vmem [resolvable:$true] %s19
      %22 = dma.vmem_to_smem %s20, 128, [#allocation2], [#allocation3]
    $region5: #{flappy_net.1} parent=1 // pred_fallthru
      _
    // Predicated region
    $region6: #{flappy_net.1} parent=1 // pred_check
      _
    $region7: #{flappy_net.1} parent=1 // pred_check_branch
      %24 = sbr.rel (0) target = $region9
    $region8: #{flappy_net.1} parent=1 // pred_region
      %s26 = ssub.s32 16, 16
      %27 = vsyncadd [#allocation5], %s26
      %s29 = sshll.u32 %s1, 4
      %s30 = int_to_ptr.vmem [resolvable:$true] %s29
      %32 = dma.vmem_to_smem %s30, 16, [#allocation4], [#allocation5]
    $region9: #{flappy_net.1} parent=1 // pred_fallthru
      _
    // Predicated region
    $region10: #{flappy_net.1} parent=1 // pred_check
      _
    $region11: #{flappy_net.1} parent=1 // pred_check_branch
      %34 = sbr.rel (0) target = $region13
    $region12: #{flappy_net.1} parent=1 // pred_region
      %s36 = ssub.s32 32, 32
      %37 = vsyncadd [#allocation5], %s36
      %s39 = sshll.u32 %s2, 4
      %s40 = int_to_ptr.vmem [resolvable:$true] %s39
      %42 = dma.vmem_to_smem %s40, 32, [#allocation6], [#allocation5]
    $region13: #{flappy_net.1} parent=1 // pred_fallthru
      _
    // Predicated region
    $region14: #{flappy_net.1} parent=1 // pred_check
      _
    $region15: #{flappy_net.1} parent=1 // pred_check_branch
      %44 = sbr.rel (0) target = $region17
    $region16: #{flappy_net.1} parent=1 // pred_region
      %s46 = ssub.s32 16, 16
      %47 = vsyncadd [#allocation8], %s46
      %s49 = sshll.u32 %s3, 4
      %s50 = int_to_ptr.vmem [resolvable:$true] %s49
      %52 = dma.vmem_to_smem %s50, 16, [#allocation7], [#allocation8]
    $region17: #{flappy_net.1} parent=1 // pred_fallthru
      _
    // Predicated region
    $region18: #{flappy_net.1} parent=1 // pred_check
      _
    $region19: #{flappy_net.1} parent=1 // pred_check_branch
      %54 = sbr.rel (0) target = $region21
    $region20: #{flappy_net.1} parent=1 // pred_region
      _
    $region21: #{flappy_net.1} parent=1 // pred_fallthru
      _
    // Predicated region
    $region22: #{flappy_net.1} parent=1 // pred_check
      _
    $region23: #{flappy_net.1} parent=1 // pred_check_branch
      %56 = sbr.rel (0) target = $region25
    $region24: #{flappy_net.1} parent=1 // pred_region
      %57 = dma.done [#allocation3], 128
    $region25: #{flappy_net.1} parent=1 // pred_fallthru
      _
    // Predicated region
    $region26: #{flappy_net.1} parent=1 // pred_check
      _
    $region27: #{flappy_net.1} parent=1 // pred_check_branch
      %59 = sbr.rel (0) target = $region29
    $region28: #{flappy_net.1} parent=1 // pred_region
      %60 = dma.done [#allocation5], 16
    $region29: #{flappy_net.1} parent=1 // pred_fallthru
      _
    // Predicated region
    $region30: #{flappy_net.1} parent=1 // pred_check
      _
    $region31: #{flappy_net.1} parent=1 // pred_check_branch
      %62 = sbr.rel (0) target = $region33
    $region32: #{flappy_net.1} parent=1 // pred_region
      %63 = dma.done [#allocation5], 32
    $region33: #{flappy_net.1} parent=1 // pred_fallthru
      _
    // Predicated region
    $region34: #{flappy_net.1} parent=1 // pred_check
      _
    $region35: #{flappy_net.1} parent=1 // pred_check_branch
      %65 = sbr.rel (0) target = $region37
    $region36: #{flappy_net.1} parent=1 // pred_region
      %66 = dma.done [#allocation8], 16
    $region37: #{flappy_net.1} parent=1 // pred_fallthru
      _
    %67 = sfence
    %v68 = vlaneseq
    %v69 = vand.u32 %v68, 127
    %v70 = vadd.s32 %v69, 128
    %v71 = vand.u32 %v69, 1
    %v72 = vand.u32 %v70, 1
    %vm73 = vcmp.eq.s32.totalorder %v71, 0
    %vm74 = vcmp.eq.s32.totalorder %v72, 0
    %s75 = smul.u32 0, 2
    %s76 = smul.addr %s75, 2
    %s77 = scalar_lea.vmem %s4, %s76
    %v78 = vld [vmem:[%s77] sm:$0xf]
    %v81 = vunpack.c.l.s4 1983009808
    %v82 = vunpack.c.0.s8 %v81
    %v83 = vlaneseq
    %v84 = vshrl.u32 %v83, 7
    %v85 = vsub.s32 %v82, %v84
    %v86 = vrot.slane %v78, %v85
    %v87 = vcombine.high %v86, %v86
    %90 = vrot.lane.b32.xlu0 %v86, 1
    %v91 = vpop.permute.xlu0 %90
    %92 = vrot.lane.b32.xlu0 %v87, 1
    %v93 = vpop.permute.xlu0 %92
    %vm94 = vcmp.lt.s32.totalorder %v69, 1
    %v95 = vsel %vm94, %v91, %v93
    %v96 = vsel %vm94, %v93, %v91
    %97 = vrot.lane.b32.xlu0 %v86, 127
    %v98 = vpop.permute.xlu0 %97
    %99 = vrot.lane.b32.xlu0 %v87, 127
    %v100 = vpop.permute.xlu0 %99
    %vm101 = vcmp.lt.s32.totalorder %v69, 127
    %v102 = vsel %vm101, %v98, %v100
    %v103 = vsel %vm101, %v100, %v98
    %v104 = vsel %vm73, %v86, %v96
    %v105 = vsel %vm74, %v87, %v95
    %v106 = vsel %vm73, %v102, %v86
    %v107 = vsel %vm74, %v103, %v87
    %s108 = sld [smem:[#allocation2]]
    %v109 = vstv %s108
    %v110 = vmul.f32 %v109, %v104
    %v111 = vmul.f32 %v109, %v105
    %s112 = sld [smem:[#allocation2 + $0x1]]
    %v113 = vstv %s112
    %v114 = vmul.f32 %v113, %v106
    %v115 = vmul.f32 %v113, %v107
    %v116 = vadd.f32 %v110, %v114
    %v117 = vadd.f32 %v111, %v115
    %s118 = sld [smem:[#allocation4]]
    %v119 = vstv %s118
    %v120 = vadd.f32 %v116, %v119
    %v121 = vadd.f32 %v117, %v119
    %v122 = vtanh.pop %v120
    %v123 = vtanh.pop %v121
    %s124 = sld [smem:[#allocation6]]
    %v125 = vstv %s124
    %v126 = vmul.f32 %v125, %v122
    %v127 = vmul.f32 %v125, %v123
    %s128 = sld [smem:[#allocation7]]
    %v129 = vstv %s128
    %v130 = vadd.f32 %v126, %v129
    %v131 = vadd.f32 %v127, %v129
    %s132 = sld [smem:[#allocation6 + $0x80]]
    %v133 = vstv %s132
    %v134 = vmul.f32 %v133, %v122
    %v135 = vmul.f32 %v133, %v123
    %s136 = sld [smem:[#allocation7 + $0x1]]
    %v137 = vstv %s136
    %v138 = vadd.f32 %v134, %v137
    %v139 = vadd.f32 %v135, %v137
    %s140 = sld [smem:[#allocation2 + $0x80]]
    %v141 = vstv %s140
    %v142 = vmul.f32 %v141, %v104
    %v143 = vmul.f32 %v141, %v105
    %s144 = sld [smem:[#allocation2 + $0x81]]
    %v145 = vstv %s144
    %v146 = vmul.f32 %v145, %v106
    %v147 = vmul.f32 %v145, %v107
    %v148 = vadd.f32 %v142, %v146
    %v149 = vadd.f32 %v143, %v147
    %s150 = sld [smem:[#allocation4 + $0x1]]
    %v151 = vstv %s150
    %v152 = vadd.f32 %v148, %v151
    %v153 = vadd.f32 %v149, %v151
    %v154 = vtanh.pop %v152
    %v155 = vtanh.pop %v153
    %s156 = sld [smem:[#allocation6 + $0x1]]
    %v157 = vstv %s156
    %v158 = vmul.f32 %v157, %v154
    %v159 = vmul.f32 %v157, %v155
    %v160 = vadd.f32 %v130, %v158
    %v161 = vadd.f32 %v131, %v159
    %s162 = sld [smem:[#allocation6 + $0x81]]
    %v163 = vstv %s162
    %v164 = vmul.f32 %v163, %v154
    %v165 = vmul.f32 %v163, %v155
    %v166 = vadd.f32 %v138, %v164
    %v167 = vadd.f32 %v139, %v165
    %s168 = sld [smem:[#allocation2 + $0x100]]
    %v169 = vstv %s168
    %v170 = vmul.f32 %v169, %v104
    %v171 = vmul.f32 %v169, %v105
    %s172 = sld [smem:[#allocation2 + $0x101]]
    %v173 = vstv %s172
    %v174 = vmul.f32 %v173, %v106
    %v175 = vmul.f32 %v173, %v107
    %v176 = vadd.f32 %v170, %v174
    %v177 = vadd.f32 %v171, %v175
    %s178 = sld [smem:[#allocation4 + $0x2]]
    %v179 = vstv %s178
    %v180 = vadd.f32 %v176, %v179
    %v181 = vadd.f32 %v177, %v179
    %v182 = vtanh.pop %v180
    %v183 = vtanh.pop %v181
    %s184 = sld [smem:[#allocation6 + $0x2]]
    %v185 = vstv %s184
    %v186 = vmul.f32 %v185, %v182
    %v187 = vmul.f32 %v185, %v183
    %v188 = vadd.f32 %v160, %v186
    %v189 = vadd.f32 %v161, %v187
    %s190 = sld [smem:[#allocation6 + $0x82]]
    %v191 = vstv %s190
    %v192 = vmul.f32 %v191, %v182
    %v193 = vmul.f32 %v191, %v183
    %v194 = vadd.f32 %v166, %v192
    %v195 = vadd.f32 %v167, %v193
    %s196 = sld [smem:[#allocation2 + $0x180]]
    %v197 = vstv %s196
    %v198 = vmul.f32 %v197, %v104
    %v199 = vmul.f32 %v197, %v105
    %s200 = sld [smem:[#allocation2 + $0x181]]
    %v201 = vstv %s200
    %v202 = vmul.f32 %v201, %v106
    %v203 = vmul.f32 %v201, %v107
    %v204 = vadd.f32 %v198, %v202
    %v205 = vadd.f32 %v199, %v203
    %s206 = sld [smem:[#allocation4 + $0x3]]
    %v207 = vstv %s206
    %v208 = vadd.f32 %v204, %v207
    %v209 = vadd.f32 %v205, %v207
    %v210 = vtanh.pop %v208
    %v211 = vtanh.pop %v209
    %s212 = sld [smem:[#allocation6 + $0x3]]
    %v213 = vstv %s212
    %v214 = vmul.f32 %v213, %v210
    %v215 = vmul.f32 %v213, %v211
    %v216 = vadd.f32 %v188, %v214
    %v217 = vadd.f32 %v189, %v215
    %s218 = sld [smem:[#allocation6 + $0x83]]
    %v219 = vstv %s218
    %v220 = vmul.f32 %v219, %v210
    %v221 = vmul.f32 %v219, %v211
    %v222 = vadd.f32 %v194, %v220
    %v223 = vadd.f32 %v195, %v221
    %s224 = sld [smem:[#allocation2 + $0x200]]
    %v225 = vstv %s224
    %v226 = vmul.f32 %v225, %v104
    %v227 = vmul.f32 %v225, %v105
    %s228 = sld [smem:[#allocation2 + $0x201]]
    %v229 = vstv %s228
    %v230 = vmul.f32 %v229, %v106
    %v231 = vmul.f32 %v229, %v107
    %v232 = vadd.f32 %v226, %v230
    %v233 = vadd.f32 %v227, %v231
    %s234 = sld [smem:[#allocation4 + $0x4]]
    %v235 = vstv %s234
    %v236 = vadd.f32 %v232, %v235
    %v237 = vadd.f32 %v233, %v235
    %v238 = vtanh.pop %v236
    %v239 = vtanh.pop %v237
    %s240 = sld [smem:[#allocation6 + $0x4]]
    %v241 = vstv %s240
    %v242 = vmul.f32 %v241, %v238
    %v243 = vmul.f32 %v241, %v239
    %v244 = vadd.f32 %v216, %v242
    %v245 = vadd.f32 %v217, %v243
    %s246 = sld [smem:[#allocation6 + $0x84]]
    %v247 = vstv %s246
    %v248 = vmul.f32 %v247, %v238
    %v249 = vmul.f32 %v247, %v239
    %v250 = vadd.f32 %v222, %v248
    %v251 = vadd.f32 %v223, %v249
    %s252 = sld [smem:[#allocation2 + $0x280]]
    %v253 = vstv %s252
    %v254 = vmul.f32 %v253, %v104
    %v255 = vmul.f32 %v253, %v105
    %s256 = sld [smem:[#allocation2 + $0x281]]
    %v257 = vstv %s256
    %v258 = vmul.f32 %v257, %v106
    %v259 = vmul.f32 %v257, %v107
    %v260 = vadd.f32 %v254, %v258
    %v261 = vadd.f32 %v255, %v259
    %s262 = sld [smem:[#allocation4 + $0x5]]
    %v263 = vstv %s262
    %v264 = vadd.f32 %v260, %v263
    %v265 = vadd.f32 %v261, %v263
    %v266 = vtanh.pop %v264
    %v267 = vtanh.pop %v265
    %s268 = sld [smem:[#allocation6 + $0x5]]
    %v269 = vstv %s268
    %v270 = vmul.f32 %v269, %v266
    %v271 = vmul.f32 %v269, %v267
    %v272 = vadd.f32 %v244, %v270
    %v273 = vadd.f32 %v245, %v271
    %s274 = sld [smem:[#allocation6 + $0x85]]
    %v275 = vstv %s274
    %v276 = vmul.f32 %v275, %v266
    %v277 = vmul.f32 %v275, %v267
    %v278 = vadd.f32 %v250, %v276
    %v279 = vadd.f32 %v251, %v277
    %v280 = vsel %vm73, %v272, %v278
    %v281 = vsel %vm74, %v273, %v279
    %v284 = vcombine.low %v280, %v281
    %v286 = vunpack.c.l.s4 1983009808
    %v287 = vunpack.c.0.s8 %v286
    %v288 = vlaneseq
    %v289 = vshrl.u32 %v288, 7
    %v290 = vsub.s32 %v287, %v289
    %v291 = vrot.slane %v284, %v290
    %s293 = smul.addr %s75, 2
    %s294 = scalar_lea.vmem %s5, %s293
    %295 = vst [vmem:[%s294] sm:$0xf] %v291
    // Predicated region
    $region38: #{flappy_net.1} parent=1 // pred_check
      _
    $region39: #{flappy_net.1} parent=1 // pred_check_branch
      %297 = sbr.rel (0) target = $region41
    $region40: #{flappy_net.1} parent=1 // pred_region
      _
    $region41: #{flappy_net.1} parent=1 // pred_fallthru
      _
    // Predicated region
    $region42: #{flappy_net.1} parent=1 // pred_check
      _
    $region43: #{flappy_net.1} parent=1 // pred_check_branch
      %299 = sbr.rel (0) target = $region45
    $region44: #{flappy_net.1} parent=1 // pred_region
      _
    $region45: #{flappy_net.1} parent=1 // pred_fallthru
      _
    %300 = vsyncpa [#allocation3], 1
    %301 = vsyncpa [#allocation5], 1
    %302 = vsyncpa [#allocation8], 1

</llo_original>
